<compile_context>
chip_gen: v7x
topology: tpu7x:2x2x1
jax: 0.10.0
libtpu: 0.0.40
codegen_flags: <defaults>
</compile_context>

<pallas_src>
import jax
import jax.numpy as jnp
from jax.experimental import pallas as pl
from jax.experimental.pallas import tpu as pltpu

KSIZE = 5
PAD = 2
BN_EPS = 1e-5

VMEM_LIMIT_BYTES = 32 * 1024 * 1024      # explicit scoped-VMEM budget, safe on v5e/v6e/v7x
_VMEM_COMPUTE_BUDGET = 20 * 1024 * 1024  # working-set target with headroom under the limit


def _fold_bn(bn, eps=BN_EPS):
    scale = bn['gamma'] / jnp.sqrt(bn['var'] + eps)
    bias = bn['beta'] - bn['mean'] * scale
    return scale.astype(jnp.float32), bias.astype(jnp.float32)


def _choose_tile_h(h, w, cin, cmid, budget=_VMEM_COMPUTE_BUDGET):
    """Largest multiple-of-8 divisor of `h` whose fused working set fits `budget`."""
    best = None
    for th in range(8, h + 1, 8):
        if h % th:
            continue
        slab = 2 * (th + 2 * PAD) * (w + 2 * PAD) * cin * 4   # double-buffered input slabs
        cols = KSIZE * (th + 2 * PAD) * w * cin * 4           # hoisted column shifts
        accs = 3 * th * w * cin * 4                           # partial accumulators + y
        z = 3 * th * w * cmid * 4                             # z + double-buffered output
        if slab + cols + accs + z <= budget:
            best = th
    return best if best is not None else h


# ---------------------------------------------------------------------------
# Kernel 1: 1x1 conv + BN + ReLU  (per-pixel matmul on the MXU)
# ---------------------------------------------------------------------------
def _pointwise_kernel(x_ref, w_ref, s_ref, b_ref, o_ref):
    th, w, cin = x_ref.shape[1], x_ref.shape[2], x_ref.shape[3]
    cout = o_ref.shape[3]
    x = x_ref[0].reshape(th * w, cin).astype(jnp.bfloat16)        # bf16 MXU operands
    z = jnp.dot(x, w_ref[...], preferred_element_type=jnp.float32)
    z = jnp.maximum(z * s_ref[...] + b_ref[...], 0.0)
    o_ref[0] = z.reshape(th, w, cout).astype(o_ref.dtype)


def pointwise_conv_bn_relu(x_nhwc, w_oi, bn, tile_h=None):
    """1x1 conv (no bias) + eval-mode BN + ReLU.  w_oi: (Cout, Cin)."""
    B, H, W, Cin = x_nhwc.shape
    Cout = w_oi.shape[0]
    if tile_h is None or H % tile_h != 0:
        tile_h = H
    nT = H // tile_h
    s, b = _fold_bn(bn)
    w = jnp.transpose(w_oi, (1, 0)).astype(jnp.bfloat16)
    return pl.pallas_call(
        _pointwise_kernel,
        out_shape=jax.ShapeDtypeStruct((B, H, W, Cout), jnp.float32),
        grid_spec=pltpu.PrefetchScalarGridSpec(
            num_scalar_prefetch=0,
            grid=(B, nT),
            in_specs=[
                pl.BlockSpec((1, tile_h, W, Cin), lambda bb, t: (bb, t, 0, 0)),
                pl.BlockSpec((Cin, Cout), lambda bb, t: (0, 0)),   # resident weights
                pl.BlockSpec((1, Cout), lambda bb, t: (0, 0)),
                pl.BlockSpec((1, Cout), lambda bb, t: (0, 0)),
            ],
            out_specs=pl.BlockSpec((1, tile_h, W, Cout), lambda bb, t: (bb, t, 0, 0)),
        ),
        compiler_params=pltpu.CompilerParams(
            dimension_semantics=("parallel", "parallel"),
            vmem_limit_bytes=VMEM_LIMIT_BYTES,
        ),
    )(x_nhwc.astype(jnp.float32), w, s[None, :], b[None, :])


# ---------------------------------------------------------------------------
# Kernel 2: fused depthwise-separable conv (the `fuse` stage)
#   depthwise 5x5 (pad 2) -> BN -> ReLU -> pointwise 1x1 -> BN -> ReLU
# ---------------------------------------------------------------------------
def _make_fuse_kernel(tile_h, out_nchw):
    def kernel(x_hbm, wdw_ref, s1_ref, b1_ref, wpw_ref, s2_ref, b2_ref,
               out_ref, slab_ref, sem_ref):
        b = pl.program_id(0)
        t = pl.program_id(1)
        nT = pl.num_programs(1)
        slab_h, wp, cin = slab_ref.shape[1], slab_ref.shape[2], slab_ref.shape[3]
        w_out = wp - 2 * PAD
        cmid = wpw_ref.shape[1]
        slot = t % 2

        def copy_desc(tile_idx, slot_idx):
            row0 = tile_idx * tile_h
            if tile_h % 8 == 0:
                row0 = pl.multiple_of(row0, 8)
            return pltpu.make_async_copy(
                x_hbm.at[b, pl.ds(row0, slab_h)],
                slab_ref.at[slot_idx],
                sem_ref.at[slot_idx])

        # Prime the pipeline for the first row-slab of this batch element.
        @pl.when(t == 0)
        def _():
            copy_desc(t, slot).start()

        # Prefetch the next slab into the other buffer while this one is processed.
        @pl.when(t + 1 < nT)
        def _():
            copy_desc(t + 1, 1 - slot).start()

        copy_desc(t, slot).wait()
        x = slab_ref[slot]                                    # (slab_h, wp, cin) f32

        # Depthwise 5x5: hoist the 5 column (W-axis / sublane) shifts, then loop dy
        # over cheap leading-dim row slices; two partial accumulators break the serial
        # accumulate chain.  Elementwise path stays f32 (v5e has no bf16 VPU).
        cols = [x[:, dx:dx + w_out, :] for dx in range(KSIZE)]
        wdw = wdw_ref[...]                                    # (25, cin)
        acc0 = jnp.zeros((tile_h, w_out, cin), jnp.float32)
        acc1 = jnp.zeros((tile_h, w_out, cin), jnp.float32)
        for dy in range(KSIZE):
            for dx in range(KSIZE):
                idx = dy * KSIZE + dx
                contrib = cols[dx][dy:dy + tile_h] * wdw[idx].reshape(1, 1, cin)
                if idx % 2 == 0:
                    acc0 = acc0 + contrib
                else:
                    acc1 = acc1 + contrib
        acc = acc0 + acc1

        # Folded BN1 + ReLU.
        y = jnp.maximum(acc * s1_ref[...].reshape(1, 1, cin)
                        + b1_ref[...].reshape(1, 1, cin), 0.0)

        # Pointwise 1x1 conv on the MXU: bf16 operands, f32 accumulation; BN2 + ReLU.
        yb = y.reshape(tile_h * w_out, cin).astype(jnp.bfloat16)
        z = jnp.dot(yb, wpw_ref[...], preferred_element_type=jnp.float32)
        z = jnp.maximum(z * s2_ref[...] + b2_ref[...], 0.0)
        z = z.reshape(tile_h, w_out, cmid)

        if out_nchw:
            # Lane-dense NCHW store: W (large in production) is on the lane axis; the
            # transpose rides the otherwise-idle XLU and removes a wrapper transpose.
            out_ref[0] = jnp.transpose(z, (2, 0, 1)).astype(out_ref.dtype)
        else:
            out_ref[0] = z.astype(out_ref.dtype)

    return kernel


def fuse_dwsep_conv(x_nhwc, p, tile_h=None, out_nchw=False):
    """Depthwise 5x5 (pad 2)+BN+ReLU + pointwise 1x1+BN+ReLU, fused and row-tiled."""
    B, H, W, Cin = x_nhwc.shape
    Cmid = p['pw_w'].shape[0]
    if tile_h is None or H % tile_h != 0:
        tile_h = _choose_tile_h(H, W, Cin, Cmid)
    nT = H // tile_h
    slab_h = tile_h + 2 * PAD
    # TODO(synk): the zero halo is still materialized by jnp.pad in HBM; an in-kernel
    # memset of the border rows/cols would avoid this extra activation pass.
    x_pad = jnp.pad(x_nhwc.astype(jnp.float32),
                    ((0, 0), (PAD, PAD), (PAD, PAD), (0, 0)))
    wdw = jnp.transpose(p['dw_w'].reshape(Cin, KSIZE * KSIZE), (1, 0)).astype(jnp.float32)
    s1, b1 = _fold_bn(p['bn1'])
    wpw = jnp.transpose(p['pw_w'][:, :, 0, 0], (1, 0)).astype(jnp.bfloat16)
    s2, b2 = _fold_bn(p['bn2'])

    if out_nchw:
        out_shape = jax.ShapeDtypeStruct((B, Cmid, H, W), jnp.float32)
        out_spec = pl.BlockSpec((1, Cmid, tile_h, W), lambda bb, t: (bb, 0, t, 0))
    else:
        out_shape = jax.ShapeDtypeStruct((B, H, W, Cmid), jnp.float32)
        out_spec = pl.BlockSpec((1, tile_h, W, Cmid), lambda bb, t: (bb, t, 0, 0))

    return pl.pallas_call(
        _make_fuse_kernel(tile_h, out_nchw),
        out_shape=out_shape,
        grid_spec=pltpu.PrefetchScalarGridSpec(
            num_scalar_prefetch=0,
            grid=(B, nT),
            in_specs=[
                pl.BlockSpec(memory_space=pl.ANY),             # padded input stays in HBM
                pl.BlockSpec((KSIZE * KSIZE, Cin), lambda bb, t: (0, 0)),
                pl.BlockSpec((1, Cin), lambda bb, t: (0, 0)),
                pl.BlockSpec((1, Cin), lambda bb, t: (0, 0)),
                pl.BlockSpec((Cin, Cmid), lambda bb, t: (0, 0)),
                pl.BlockSpec((1, Cmid), lambda bb, t: (0, 0)),
                pl.BlockSpec((1, Cmid), lambda bb, t: (0, 0)),
            ],
            out_specs=out_spec,
            scratch_shapes=[
                pltpu.VMEM((2, slab_h, W + 2 * PAD, Cin), jnp.float32),  # double-buffered slab
                pltpu.SemaphoreType.DMA((2,)),
            ],
        ),
        compiler_params=pltpu.CompilerParams(
            dimension_semantics=("parallel", "arbitrary"),
            vmem_limit_bytes=VMEM_LIMIT_BYTES,
        ),
    )(x_pad, wdw, s1[None, :], b1[None, :], wpw, s2[None, :], b2[None, :])


# ---------------------------------------------------------------------------
# Non-kernel pieces (plain JAX): layout, bilinear resize, ASPP glue
# ---------------------------------------------------------------------------
def _to_nhwc(x_nchw):
    return jnp.transpose(x_nchw, (0, 2, 3, 1)).astype(jnp.float32)


def _resize_bilinear_ac(x_nhwc, oh, ow):
    """Bilinear resize, align_corners=True (matches F.interpolate)."""
    B, H, W, C = x_nhwc.shape

    def coords(osize, isize):
        if osize == 1:
            z = jnp.zeros((1,), jnp.int32)
            return z, z, jnp.zeros((1,), jnp.float32)
        pos = jnp.arange(osize, dtype=jnp.float32) * ((isize - 1) / (osize - 1))
        i0 = jnp.clip(jnp.floor(pos).astype(jnp.int32), 0, isize - 1)
        i1 = jnp.minimum(i0 + 1, isize - 1)
        return i0, i1, pos - i0.astype(jnp.float32)

    y0, y1, fy = coords(oh, H)
    x0, x1, fx = coords(ow, W)
    fx = fx.reshape(1, 1, ow, 1)
    fy = fy.reshape(1, oh, 1, 1)
    top = x_nhwc[:, y0][:, :, x0] * (1.0 - fx) + x_nhwc[:, y0][:, :, x1] * fx
    bot = x_nhwc[:, y1][:, :, x0] * (1.0 - fx) + x_nhwc[:, y1][:, :, x1] * fx
    return top * (1.0 - fy) + bot * fy


def aspp_forward(x_nhwc, p, tile_h=None):
    """Standard DeepLabV3-style ASPP, eval mode (Dropout = identity)."""
    B, H, W, _ = x_nhwc.shape
    branches = [pointwise_conv_bn_relu(x_nhwc, p['b0_w'][:, :, 0, 0], p['b0_bn'], tile_h)]
    for rp in p['rates']:
        r = rp['rate']
        w = jnp.transpose(rp['w'], (2, 3, 1, 0))               # OIHW -> HWIO
        # TODO(synk): atrous 3x3 convs are left to XLA rather than ported to Pallas.
        y = jax.lax.conv_general_dilated(
            x_nhwc, w, (1, 1), [(r, r), (r, r)], rhs_dilation=(r, r),
            dimension_numbers=('NHWC', 'HWIO', 'NHWC'))
        s, b = _fold_bn(rp['bn'])
        branches.append(jnp.maximum(y * s + b, 0.0))
    # Image-pooling branch (global average pooling).
    g = jnp.mean(x_nhwc, axis=(1, 2))
    g = jnp.dot(g, jnp.transpose(p['pool_w'][:, :, 0, 0], (1, 0)))
    s, b = _fold_bn(p['pool_bn'])
    g = jnp.maximum(g * s + b, 0.0)
    branches.append(jnp.broadcast_to(g[:, None, None, :], (B, H, W, g.shape[-1])))
    cat = jnp.concatenate(branches, axis=-1)
    return pointwise_conv_bn_relu(cat, p['proj_w'][:, :, 0, 0], p['proj_bn'], tile_h)


def single_wholistic_segmentor_decoder(features, params, feature_key, low_level_key,
                                       tile_h=None):
    """Forward pass.  `features` values are NCHW; the returned tensor is NCHW."""
    x = aspp_forward(_to_nhwc(features[feature_key]), params['aspp'], tile_h)
    n_stage = len(low_level_key)
    for i, lk in enumerate(low_level_key):
        pr = params['project'][i]
        l = pointwise_conv_bn_relu(_to_nhwc(features[lk]), pr['w'][:, :, 0, 0],
                                   pr['bn'], tile_h)
        x = _resize_bilinear_ac(x, l.shape[1], l.shape[2])
        x = jnp.concatenate([x, l], axis=-1)
        # The last stage writes NCHW straight from the kernel (lane-dense store, no
        # wrapper transpose); intermediate stages stay NHWC for the next stage.
        x = fuse_dwsep_conv(x, params['fuse'][i], tile_h=tile_h,
                            out_nchw=(i == n_stage - 1))
    return x


# ---------------------------------------------------------------------------
# Synthetic parameters
# ---------------------------------------------------------------------------
def _init_bn(key, c):
    k = jax.random.split(key, 4)
    return {'gamma': jax.random.uniform(k[0], (c,), jnp.float32, 0.5, 1.5),
            'beta': 0.1 * jax.random.normal(k[1], (c,), jnp.float32),
            'mean': 0.1 * jax.random.normal(k[2], (c,), jnp.float32),
            'var': jax.random.uniform(k[3], (c,), jnp.float32, 0.5, 1.5)}


def init_params(key, in_channels, low_level_channels, low_level_channels_project,
                decoder_channels, atrous_rates, aspp_channels=None):
    if aspp_channels is None:
        aspp_channels = decoder_channels
    kit = iter(jax.random.split(key, 64))
    nk = lambda: next(kit)
    nrm = lambda k, s: 0.1 * jax.random.normal(k, s, jnp.float32)

    aspp = {
        'b0_w': nrm(nk(), (aspp_channels, in_channels, 1, 1)),
        'b0_bn': _init_bn(nk(), aspp_channels),
        'rates': [{'rate': r,
                   'w': nrm(nk(), (aspp_channels, in_channels, 3, 3)),
                   'bn': _init_bn(nk(), aspp_channels)} for r in atrous_rates],
        'pool_w': nrm(nk(), (aspp_channels, in_channels, 1, 1)),
        'pool_bn': _init_bn(nk(), aspp_channels),
        'proj_w': nrm(nk(), (aspp_channels,
                             (2 + len(atrous_rates)) * aspp_channels, 1, 1)),
        'proj_bn': _init_bn(nk(), aspp_channels),
    }
    project, fuse = [], []
    for i, (lc, pc) in enumerate(zip(low_level_channels, low_level_channels_project)):
        project.append({'w': nrm(nk(), (pc, lc, 1, 1)), 'bn': _init_bn(nk(), pc)})
        fin = (aspp_channels if i == 0 else decoder_channels) + pc
        fuse.append({'dw_w': nrm(nk(), (fin, 1, KSIZE, KSIZE)),
                     'bn1': _init_bn(nk(), fin),
                     'pw_w': nrm(nk(), (decoder_channels, fin, 1, 1)),
                     'bn2': _init_bn(nk(), decoder_channels)})
    return {'aspp': aspp, 'project': project, 'fuse': fuse}


# ---------------------------------------------------------------------------
# Pure-JAX (NCHW, f32) reference mirroring the PyTorch module in eval mode
# ---------------------------------------------------------------------------
def _ref_conv(x, w, padding=0, dilation=1, groups=1):
    return jax.lax.conv_general_dilated(
        x, w, (1, 1), [(padding, padding)] * 2, rhs_dilation=(dilation, dilation),
        dimension_numbers=('NCHW', 'OIHW', 'NCHW'), feature_group_count=groups)


def _ref_bn(y, bn, eps=BN_EPS):
    s = bn['gamma'] / jnp.sqrt(bn['var'] + eps)
    b = bn['beta'] - bn['mean'] * s
    return y * s[None, :, None, None] + b[None, :, None, None]


def _ref_cbr(x, w, bn, padding=0, dilation=1, groups=1):
    return jnp.maximum(_ref_bn(_ref_conv(x, w, padding, dilation, groups), bn), 0.0)


def _ref_aspp(x, p):
    outs = [_ref_cbr(x, p['b0_w'], p['b0_bn'])]
    for rp in p['rates']:
        outs.append(_ref_cbr(x, rp['w'], rp['bn'],
                             padding=rp['rate'], dilation=rp['rate']))
    g = jnp.mean(x, axis=(2, 3), keepdims=True)
    g = _ref_cbr(g, p['pool_w'], p['pool_bn'])
    outs.append(jnp.broadcast_to(g, (x.shape[0], g.shape[1], x.shape[2], x.shape[3])))
    return _ref_cbr(jnp.concatenate(outs, axis=1), p['proj_w'], p['proj_bn'])


def _ref_resize(x_nchw, oh, ow):
    x = jnp.transpose(x_nchw, (0, 2, 3, 1))
    x = _resize_bilinear_ac(x, oh, ow)
    return jnp.transpose(x, (0, 3, 1, 2))


def _ref_decoder(features, params, feature_key, low_level_key):
    x = _ref_aspp(features[feature_key].astype(jnp.float32), params['aspp'])
    for i, lk in enumerate(low_level_key):
        pr = params['project'][i]
        l = _ref_cbr(features[lk].astype(jnp.float32), pr['w'], pr['bn'])
        x = _ref_resize(x, l.shape[2], l.shape[3])
        x = jnp.concatenate([x, l], axis=1)
        fp = params['fuse'][i]
        cin = fp['dw_w'].shape[0]
        x = _ref_cbr(x, fp['dw_w'], fp['bn1'], padding=PAD, groups=cin)
        x = _ref_cbr(x, fp['pw_w'], fp['bn2'])
    return x


if __name__ == "__main__":
    # Small synthetic configuration consistent with the module's constructor.
    in_channels = 32
    feature_key = 'res5'
    low_level_channels = [24, 16]
    low_level_key = ['res3', 'res2']
    low_level_channels_project = [16, 8]
    decoder_channels = 32
    atrous_rates = (2, 4, 6)

    root = jax.random.PRNGKey(0)
    k_feat, k_par = jax.random.split(root)
    kf = jax.random.split(k_feat, 3)
    features = {
        'res5': jax.random.normal(kf[0], (2, in_channels, 8, 12), jnp.float32),
        'res3': jax.random.normal(kf[1], (2, low_level_channels[0], 16, 24), jnp.float32),
        'res2': jax.random.normal(kf[2], (2, low_level_channels[1], 32, 48), jnp.float32),
    }
    params = init_params(k_par, in_channels, low_level_channels,
                         low_level_channels_project, decoder_channels, atrous_rates)

    # tile_h=8 exercises the multi-tile halo-DMA + prefetch path even at toy sizes.
    out = single_wholistic_segmentor_decoder(features, params, feature_key,
                                             low_level_key, tile_h=8)
    out = jax.block_until_ready(out)
    assert out.shape == (2, decoder_channels, 32, 48), out.shape

    ref = _ref_decoder(features, params, feature_key, low_level_key)
    err = float(jnp.max(jnp.abs(out - ref)))
    tol = 0.05 + 0.02 * float(jnp.max(jnp.abs(ref)))   # bf16 MXU operands -> loose tol
    assert err < tol, f"max abs err {err} (tol {tol})"
    print("KERNEL_OK")
</pallas_src>

<mosaic_0001>
module attributes {stable_mosaic.version = 11 : i64} {
  func.func @_pointwise_kernel(%arg0: i32, %arg1: i32, %arg2: memref<1x8x12x32xf32, #tpu.memory_space<vmem>>, %arg3: memref<32x32xbf16, #tpu.memory_space<vmem>>, %arg4: memref<1x32xf32, #tpu.memory_space<vmem>>, %arg5: memref<1x32xf32, #tpu.memory_space<vmem>>, %arg6: memref<1x8x12x32xf32, #tpu.memory_space<vmem>>) attributes {dimension_semantics = [#tpu.dimension_semantics<parallel>, #tpu.dimension_semantics<parallel>], iteration_bounds = array<i64: 2, 1>, scalar_prefetch = 0 : i64, scratch_operands = 0 : i64, tpu.core_type = #tpu.core_type<tc>, window_params = [{transform_indices = @transform_0, window_bounds = array<i64: 1, 8, 12, 32>}, {pipeline_mode = #tpu.pipeline_mode<synchronous>, transform_indices = @transform_1, window_bounds = array<i64: 32, 32>}, {pipeline_mode = #tpu.pipeline_mode<synchronous>, transform_indices = @transform_2, window_bounds = array<i64: 1, 32>}, {pipeline_mode = #tpu.pipeline_mode<synchronous>, transform_indices = @transform_3, window_bounds = array<i64: 1, 32>}, {transform_indices = @transform_4, window_bounds = array<i64: 1, 8, 12, 32>}]} {
    %c0 = arith.constant 0 : index
    %c0_0 = arith.constant 0 : index
    %c0_1 = arith.constant 0 : index
    %c0_2 = arith.constant 0 : index
    %0 = vector.load %arg2[%c0, %c0_0, %c0_1, %c0_2] : memref<1x8x12x32xf32, #tpu.memory_space<vmem>>, vector<1x8x12x32xf32>
    %1 = vector.shape_cast %0 : vector<1x8x12x32xf32> to vector<8x12x32xf32>
    %2 = vector.shape_cast %1 : vector<8x12x32xf32> to vector<96x32xf32>
    %3 = arith.truncf %2 : vector<96x32xf32> to vector<96x32xbf16>
    %c0_3 = arith.constant 0 : index
    %c0_4 = arith.constant 0 : index
    %4 = vector.load %arg3[%c0_3, %c0_4] : memref<32x32xbf16, #tpu.memory_space<vmem>>, vector<32x32xbf16>
    %cst = arith.constant dense<0.000000e+00> : vector<96x32xf32>
    %5 = tpu.matmul %3, %4, %cst {dimension_numbers = #tpu.dot_dimension_numbers<[1], [0], [0], [1], [0, 0, 1, 1], [], []>} : vector<96x32xbf16>, vector<32x32xbf16>, vector<96x32xf32> -> vector<96x32xf32>
    %c0_5 = arith.constant 0 : index
    %c0_6 = arith.constant 0 : index
    %6 = vector.load %arg4[%c0_5, %c0_6] : memref<1x32xf32, #tpu.memory_space<vmem>>, vector<1x32xf32>
    %7 = vector.broadcast %6 : vector<1x32xf32> to vector<96x32xf32>
    %8 = arith.mulf %5, %7 : vector<96x32xf32>
    %c0_7 = arith.constant 0 : index
    %c0_8 = arith.constant 0 : index
    %9 = vector.load %arg5[%c0_7, %c0_8] : memref<1x32xf32, #tpu.memory_space<vmem>>, vector<1x32xf32>
    %10 = vector.broadcast %9 : vector<1x32xf32> to vector<96x32xf32>
    %11 = arith.addf %8, %10 : vector<96x32xf32>
    %cst_9 = arith.constant 0.000000e+00 : f32
    %12 = vector.broadcast %cst_9 : f32 to vector<96x32xf32>
    %13 = arith.maximumf %11, %12 : vector<96x32xf32>
    %14 = vector.shape_cast %13 : vector<96x32xf32> to vector<8x12x32xf32>
    %c0_10 = arith.constant 0 : index
    %c0_11 = arith.constant 0 : index
    %c0_12 = arith.constant 0 : index
    %c0_13 = arith.constant 0 : index
    %15 = vector.load %arg6[%c0_10, %c0_11, %c0_12, %c0_13] : memref<1x8x12x32xf32, #tpu.memory_space<vmem>>, vector<1x8x12x32xf32>
    %16 = vector.shape_cast %15 : vector<1x8x12x32xf32> to vector<8x12x32xf32>
    %17 = vector.shape_cast %14 : vector<8x12x32xf32> to vector<1x8x12x32xf32>
    tpu.vector_store %arg6[%c0_10, %c0_11, %c0_12, %c0_13], %17 {strides = array<i32>} : memref<1x8x12x32xf32, #tpu.memory_space<vmem>>, vector<1x8x12x32xf32>,
    return
  }
  func.func @transform_0(%arg0: i32, %arg1: i32) -> (i32, i32, i32, i32) {
    %c0_i32 = arith.constant 0 : i32
    %c0_i32_0 = arith.constant 0 : i32
    %c0_i32_1 = arith.constant 0 : i32
    return %arg0, %arg1, %c0_i32, %c0_i32_0 : i32, i32, i32, i32
  }
  func.func @transform_1(%arg0: i32, %arg1: i32) -> (i32, i32) {
    %c0_i32 = arith.constant 0 : i32
    %c0_i32_0 = arith.constant 0 : i32
    %c0_i32_1 = arith.constant 0 : i32
    return %c0_i32, %c0_i32_0 : i32, i32
  }
  func.func @transform_2(%arg0: i32, %arg1: i32) -> (i32, i32) {
    %c0_i32 = arith.constant 0 : i32
    %c0_i32_0 = arith.constant 0 : i32
    %c0_i32_1 = arith.constant 0 : i32
    return %c0_i32, %c0_i32_0 : i32, i32
  }
  func.func @transform_3(%arg0: i32, %arg1: i32) -> (i32, i32) {
    %c0_i32 = arith.constant 0 : i32
    %c0_i32_0 = arith.constant 0 : i32
    %c0_i32_1 = arith.constant 0 : i32
    return %c0_i32, %c0_i32_0 : i32, i32
  }
  func.func @transform_4(%arg0: i32, %arg1: i32) -> (i32, i32, i32, i32) {
    %c0_i32 = arith.constant 0 : i32
    %c0_i32_0 = arith.constant 0 : i32
    %c0_i32_1 = arith.constant 0 : i32
    return %arg0, %arg1, %c0_i32, %c0_i32_0 : i32, i32, i32, i32
  }
}

</mosaic_0001>

<llo_original>
// kernel: tpu_custom_call.1
$region0: #{tpu_custom_call.1}
  #allocation0 [shape = 'u32[]', space=smem, size = 0x4, offset = 0x4, fixed_abs, tag = 'smem constant byte address 0x4 - core index']
  #allocation1 [shape = 'u32[144,128]{1,0:T(1,128)}', space=vmem, size = 0x12000, scoped, tag = 'internal scratch']
  %s0 = inlined_call_operand.vmem [shape: f32[2,8,12,32], index: 0, kind: input, shape index: {}]
  %s1 = inlined_call_operand.vmem [shape: bf16[32,32], index: 1, kind: input, shape index: {}]
  %s2 = inlined_call_operand.vmem [shape: f32[1,32], index: 2, kind: input, shape index: {}]
  %s3 = inlined_call_operand.vmem [shape: f32[1,32], index: 3, kind: input, shape index: {}]
  %s4 = inlined_call_operand.vmem [shape: f32[2,8,12,32], index: 4, kind: output, shape index: {}]
  %s5 = sld [smem:[#allocation0]]
  $region49: #{tpu_custom_call.1} parent=0
    _
  %s7 = ssub.s32 1, %s5
  %s8 = scalar_select 0, %s7, %s5
  loop: start=0, step=1, limit=4
  $region2: #{tpu_custom_call.1} parent=0 // loop_pre_header
    _
  $region3: #{tpu_custom_call.1} parent=0 // loop_header
    %s10 = sphi 0, %s14
    %p11 = scmp.ge.s32.totalorder %s10, 4
    %s17 = sphi 0, %s29
    %s18 = sphi 0, %s25
    %s19 = sphi 0, %s17
    %s20 = sphi 0, %s18
    %s21 = sphi 0, %s19
    %s22 = sphi 0, %s20
    %s34 = sphi 0, %s36
    %s37 = sphi 0, %s34
    %s38 = sphi 0, %s37
    %s54 = sphi 0, %s38
    %s58 = sphi 0, %s58
    %s60 = sphi 0, %s58
    %s61 = sphi 0, %s60
    %s75 = sphi 0, %s61
    %s79 = sphi 0, %s79
    %s81 = sphi 0, %s79
    %s82 = sphi 0, %s81
    %s96 = sphi 0, %s82
    %s100 = sphi 0, %s100
    %s102 = sphi 0, %s100
    %s103 = sphi 0, %s102
    %s117 = sphi 0, %s103
    %s125 = sphi 0, %s127
    %s128 = sphi 0, %s125
    %s129 = sphi 0, %s128
    %s145 = sphi 0, %s129
  $region4: #{tpu_custom_call.1} parent=0 // loop_header_branch
    %13 = sbr.rel (%p11) target = $region8
  $region5: #{tpu_custom_call.1} parent=0 // loop_body
    %s15 = ssub.s32 %s10, 1
    %s16 = ssub.s32 %s10, 2
    %s23 = sadd.s32 1, %s18
    %p24 = scmp.ge.s32.totalorder %s23, 1
    %s25 = scalar_select %p24, 0, %s23
    %s26 = sadd.s32 1, %s17
    %s27 = scalar_select %p24, %s26, %s17
    %p28 = scmp.ge.s32.totalorder %s27, 2
    %s29 = scalar_select %p28, 0, %s27
    %s30 = ssub.s32 %s17, %s29
    %s31 = ssub.s32 %s18, %s25
    %s32 = sor.u32 %s30, %s31
    %p33 = scmp.eq.s32.totalorder %s32, 0
    %s35 = sadd.s32 %s34, 1
    %s36 = scalar_select %p33, %s34, %s35
    %p39 = pneg %p33
    %p40 = scmp.eq.s32.totalorder %s10, 1
    %p41 = por %p39, %p40
    %p42 = scmp.ne.s32.totalorder %s34, %s37
    %p43 = scmp.eq.s32.totalorder %s10, 0
    %p44 = por %p42, %p43
    %p45 = scmp.ne.s32.totalorder %s34, %s37
    %p46 = scmp.eq.s32.totalorder %s15, 1
    %p47 = por %p45, %p46
    %p48 = scmp.ne.s32.totalorder %s37, %s38
    %p49 = scmp.eq.s32.totalorder %s15, 0
    %p50 = por %p48, %p49
    %p51 = scmp.ne.s32.totalorder %s37, %s38
    %p52 = scmp.eq.s32.totalorder %s16, 1
    %p53 = por %p51, %p52
    %p55 = scmp.ne.s32.totalorder %s38, %s54
    %p56 = scmp.eq.s32.totalorder %s16, 0
    %p57 = por %p55, %p56
    %s59 = sadd.s32 %s58, 1
    %p62 = scmp.eq.s32.totalorder %s10, 1
    %p63 = scmp.ne.s32.totalorder %s58, %s60
    %p64 = scmp.eq.s32.totalorder %s10, 0
    %p65 = por %p63, %p64
    %p66 = scmp.ne.s32.totalorder %s58, %s60
    %p67 = scmp.eq.s32.totalorder %s15, 1
    %p68 = por %p66, %p67
    %p69 = scmp.ne.s32.totalorder %s60, %s61
    %p70 = scmp.eq.s32.totalorder %s15, 0
    %p71 = por %p69, %p70
    %p72 = scmp.ne.s32.totalorder %s60, %s61
    %p73 = scmp.eq.s32.totalorder %s16, 1
    %p74 = por %p72, %p73
    %p76 = scmp.ne.s32.totalorder %s61, %s75
    %p77 = scmp.eq.s32.totalorder %s16, 0
    %p78 = por %p76, %p77
    %s80 = sadd.s32 %s79, 1
    %p83 = scmp.eq.s32.totalorder %s10, 1
    %p84 = scmp.ne.s32.totalorder %s79, %s81
    %p85 = scmp.eq.s32.totalorder %s10, 0
    %p86 = por %p84, %p85
    %p87 = scmp.ne.s32.totalorder %s79, %s81
    %p88 = scmp.eq.s32.totalorder %s15, 1
    %p89 = por %p87, %p88
    %p90 = scmp.ne.s32.totalorder %s81, %s82
    %p91 = scmp.eq.s32.totalorder %s15, 0
    %p92 = por %p90, %p91
    %p93 = scmp.ne.s32.totalorder %s81, %s82
    %p94 = scmp.eq.s32.totalorder %s16, 1
    %p95 = por %p93, %p94
    %p97 = scmp.ne.s32.totalorder %s82, %s96
    %p98 = scmp.eq.s32.totalorder %s16, 0
    %p99 = por %p97, %p98
    %s101 = sadd.s32 %s100, 1
    %p104 = scmp.eq.s32.totalorder %s10, 1
    %p105 = scmp.ne.s32.totalorder %s100, %s102
    %p106 = scmp.eq.s32.totalorder %s10, 0
    %p107 = por %p105, %p106
    %p108 = scmp.ne.s32.totalorder %s100, %s102
    %p109 = scmp.eq.s32.totalorder %s15, 1
    %p110 = por %p108, %p109
    %p111 = scmp.ne.s32.totalorder %s102, %s103
    %p112 = scmp.eq.s32.totalorder %s15, 0
    %p113 = por %p111, %p112
    %p114 = scmp.ne.s32.totalorder %s102, %s103
    %p115 = scmp.eq.s32.totalorder %s16, 1
    %p116 = por %p114, %p115
    %p118 = scmp.ne.s32.totalorder %s103, %s117
    %p119 = scmp.eq.s32.totalorder %s16, 0
    %p120 = por %p118, %p119
    %s121 = ssub.s32 %s17, %s29
    %s122 = ssub.s32 %s18, %s25
    %s123 = sor.u32 %s121, %s122
    %p124 = scmp.eq.s32.totalorder %s123, 0
    %s126 = sadd.s32 %s125, 1
    %s127 = scalar_select %p124, %s125, %s126
    %p130 = pneg %p124
    %p131 = scmp.eq.s32.totalorder %s10, 1
    %p132 = por %p130, %p131
    %p133 = scmp.ne.s32.totalorder %s125, %s128
    %p134 = scmp.eq.s32.totalorder %s10, 0
    %p135 = por %p133, %p134
    %p136 = scmp.ne.s32.totalorder %s125, %s128
    %p137 = scmp.eq.s32.totalorder %s15, 1
    %p138 = por %p136, %p137
    %p139 = scmp.ne.s32.totalorder %s128, %s129
    %p140 = scmp.eq.s32.totalorder %s15, 0
    %p141 = por %p139, %p140
    %p142 = scmp.ne.s32.totalorder %s128, %s129
    %p143 = scmp.eq.s32.totalorder %s16, 1
    %p144 = por %p142, %p143
    %p146 = scmp.ne.s32.totalorder %s129, %s145
    %p147 = scmp.eq.s32.totalorder %s16, 0
    %p148 = por %p146, %p147
    %p149 = scmp.le.s32.totalorder 1, %s10
    %p150 = scmp.lt.s32.totalorder %s10, 3
    %p151 = pnand %p149, %p150
    %p152 = pneg %p151
    // Predicated region
    $region9: #{tpu_custom_call.1} parent=5 // pred_check
      _
    $region10: #{tpu_custom_call.1} parent=5 // pred_check_branch
      %154 = sbr.rel (%p151) target = $region12
    $region11: #{tpu_custom_call.1} parent=5 // pred_region
      %s155 = ssub.s32 %s10, 1
      // Predicated region
      $region13: #{tpu_custom_call.1} parent=11 // pred_check
        %p156 = pneg %p71
      $region14: #{tpu_custom_call.1} parent=11 // pred_check_branch
        %158 = sbr.rel (%p156) target = $region16
      $region15: #{tpu_custom_call.1} parent=11 // pred_region
        _
      $region16: #{tpu_custom_call.1} parent=11 // pred_fallthru
        _
      // Predicated region
      $region17: #{tpu_custom_call.1} parent=11 // pred_check
        %p159 = pneg %p92
      $region18: #{tpu_custom_call.1} parent=11 // pred_check_branch
        %161 = sbr.rel (%p159) target = $region20
      $region19: #{tpu_custom_call.1} parent=11 // pred_region
        _
      $region20: #{tpu_custom_call.1} parent=11 // pred_fallthru
        _
      // Predicated region
      $region21: #{tpu_custom_call.1} parent=11 // pred_check
        %p162 = pneg %p113
      $region22: #{tpu_custom_call.1} parent=11 // pred_check_branch
        %164 = sbr.rel (%p162) target = $region24
      $region23: #{tpu_custom_call.1} parent=11 // pred_region
        _
      $region24: #{tpu_custom_call.1} parent=11 // pred_fallthru
        _
    $region12: #{tpu_custom_call.1} parent=5 // pred_fallthru
      _
    %p165 = scmp.lt.s32.totalorder %s10, 2
    // Predicated region
    $region25: #{tpu_custom_call.1} parent=5 // pred_check
      %p166 = pneg %p165
    $region26: #{tpu_custom_call.1} parent=5 // pred_check_branch
      %168 = sbr.rel (%p166) target = $region28
    $region27: #{tpu_custom_call.1} parent=5 // pred_region
      // Predicated region
      $region29: #{tpu_custom_call.1} parent=27 // pred_check
        %p169 = pneg %p44
      $region30: #{tpu_custom_call.1} parent=27 // pred_check_branch
        %171 = sbr.rel (%p169) target = $region32
      $region31: #{tpu_custom_call.1} parent=27 // pred_region
        %s172 = smul.u32 8, %s18
        %p173 = scmp.lt.s32.totalorder %s17, 1
        %s174 = scalar_select %p173, %s17, 1
        %p175 = scmp.lt.s32.totalorder %s172, 7
        %s176 = scalar_select %p175, %s172, 7
        %s177 = smul.addr %s176, 2
        %s178 = smul.addr %s174, 16
        %s179 = sadd.s32 %s177, %s178
        %s180 = smul.addr %s179, 8
        %s181 = scalar_lea.vmem %s0, %s180
        %s182 = smul.u32 8, %s18
      $region32: #{tpu_custom_call.1} parent=27 // pred_fallthru
        _
    $region28: #{tpu_custom_call.1} parent=5 // pred_fallthru
      _
    %p183 = scmp.le.s32.totalorder 1, %s10
    %p184 = scmp.lt.s32.totalorder %s10, 3
    %p185 = pnand %p183, %p184
    %p186 = pneg %p185
    // Predicated region
    $region33: #{tpu_custom_call.1} parent=5 // pred_check
      _
    $region34: #{tpu_custom_call.1} parent=5 // pred_check_branch
      %188 = sbr.rel (%p185) target = $region36
    $region35: #{tpu_custom_call.1} parent=5 // pred_region
      %s189 = ssub.s32 %s10, 1
      %s190 = smul.u32 8, %s20
      %p191 = scmp.lt.s32.totalorder %s19, 1
      %s192 = scalar_select %p191, %s19, 1
      %p193 = scmp.lt.s32.totalorder %s190, 7
      %s194 = scalar_select %p193, %s190, 7
      %s195 = smul.addr %s194, 2
      %s196 = smul.addr %s192, 16
      %s197 = sadd.s32 %s195, %s196
      %s198 = smul.addr %s197, 8
      %s199 = scalar_lea.vmem %s0, %s198
      %p200 = pneg %p50
      %p201 = pneg %p47
      %p202 = pneg %p71
      %p203 = pneg %p68
      %p204 = pneg %p92
      %p205 = pneg %p89
      %p206 = pneg %p113
      %p207 = pneg %p110
      %p208 = pneg %p141
      %p209 = pneg %p138
      %s210 = smul.u32 8, %s20
      %p211 = scmp.lt.s32.totalorder %s19, 1
      %s212 = scalar_select %p211, %s19, 1
      %p213 = scmp.lt.s32.totalorder %s210, 7
      %s214 = scalar_select %p213, %s210, 7
      %s215 = smul.addr %s214, 2
      %s216 = smul.addr %s212, 16
      %s217 = sadd.s32 %s215, %s216
      %s218 = smul.addr %s217, 8
      %s219 = scalar_lea.vmem %s4, %s218
      %s220 = smul.u32 8, %s20
      %p221 = scmp.lt.s32.totalorder %s19, 1
      %s222 = scalar_select %p221, %s19, 1
      %p223 = scmp.lt.s32.totalorder %s220, 7
      %s224 = scalar_select %p223, %s220, 7
      %s225 = smul.addr %s224, 2
      %s226 = smul.addr %s222, 16
      %s227 = sadd.s32 %s225, %s226
      %s228 = smul.addr %s227, 8
      %s229 = scalar_lea.vmem %s0, %s228
      %s230 = smul.u32 8, %s20
      %s231 = smul.u32 8, %s20
      %p232 = scmp.lt.s32.totalorder %s19, 1
      %s233 = scalar_select %p232, %s19, 1
      %p234 = scmp.lt.s32.totalorder %s231, 7
      %s235 = scalar_select %p234, %s231, 7
      %s236 = smul.addr %s235, 2
      %s237 = smul.addr %s233, 16
      %s238 = sadd.s32 %s236, %s237
      %s239 = smul.addr %s238, 8
      %s240 = scalar_lea.vmem %s4, %s239
      %s241 = smul.u32 8, %s20
      %v243 = vld [vmem:[%s229] sm:$0xff]
      %v244 = vld [vmem:[%s229 + $0x8] sm:$0xf]
      %v245 = vld [vmem:[%s229 + $0x10] sm:$0xff]
      %v246 = vld [vmem:[%s229 + $0x18] sm:$0xf]
      %v247 = vld [vmem:[%s229 + $0x20] sm:$0xff]
      %v248 = vld [vmem:[%s229 + $0x28] sm:$0xf]
      %v249 = vld [vmem:[%s229 + $0x30] sm:$0xff]
      %v250 = vld [vmem:[%s229 + $0x38] sm:$0xf]
      %v251 = vld [vmem:[%s229 + $0x40] sm:$0xff]
      %v252 = vld [vmem:[%s229 + $0x48] sm:$0xf]
      %v253 = vld [vmem:[%s229 + $0x50] sm:$0xff]
      %v254 = vld [vmem:[%s229 + $0x58] sm:$0xf]
      %v255 = vld [vmem:[%s229 + $0x60] sm:$0xff]
      %v256 = vld [vmem:[%s229 + $0x68] sm:$0xf]
      %v257 = vld [vmem:[%s229 + $0x70] sm:$0xff]
      %v258 = vld [vmem:[%s229 + $0x78] sm:$0xf]
      %v275 = vcombine.high %v243, %v243
      %v276 = vcombine.high %v245, %v245
      %v277 = vcombine.high %v247, %v247
      %v278 = vcombine.high %v249, %v249
      %v279 = vcombine.high %v251, %v251
      %v280 = vcombine.high %v253, %v253
      %v281 = vcombine.high %v255, %v255
      %v282 = vcombine.high %v257, %v257
      %v283 = vcombine.low %v243, %v275
      %v284 = vcombine.low %v244, %v245
      %v285 = vcombine.low %v276, %v246
      %v286 = vcombine.low %v247, %v277
      %v287 = vcombine.low %v248, %v249
      %v288 = vcombine.low %v278, %v250
      %v289 = vcombine.low %v251, %v279
      %v290 = vcombine.low %v252, %v253
      %v291 = vcombine.low %v280, %v254
      %v292 = vcombine.low %v255, %v281
      %v293 = vcombine.low %v256, %v257
      %v294 = vcombine.low %v282, %v258
      %v307 = vpack.c.bf16 %v284, %v283
      %v308 = vpack.c.bf16 %v286, %v285
      %v309 = vpack.c.bf16 %v288, %v287
      %v310 = vpack.c.bf16 %v290, %v289
      %v311 = vpack.c.bf16 %v292, %v291
      %v312 = vpack.c.bf16 %v294, %v293
      %v313 = vld [vmem:[%s1] sm:$0xf]
      %v314 = vld [vmem:[%s1 + $0x4] sm:$0xf]
      %v315 = vld [vmem:[%s1 + $0x8] sm:$0xf]
      %v316 = vld [vmem:[%s1 + $0xc] sm:$0xf]
      %v321 = vunpack.c.l.b16 %v313
      %v322 = vunpack.c.l.b16 %v314
      %v323 = vunpack.c.l.b16 %v315
      %v324 = vunpack.c.l.b16 %v316
      %v325 = vpack.c.b16 %v322, %v321
      %v326 = vpack.c.b16 %v324, %v323
      %vm329 = vcmask 261120
      %v331 = vsel %vm329, %v307, 0
      %v334 = vsel %vm329, %v308, 0
      %v337 = vsel %vm329, %v309, 0
      %v340 = vsel %vm329, %v310, 0
      %v343 = vsel %vm329, %v311, 0
      %v346 = vsel %vm329, %v312, 0
      %348 = vmatprep.subr.bf16.mxu0 0
      %349 = vmatpush1.bf16.msra.mxu0 %v325
      %350 = vmatprep.subr.bf16.mxu0 0
      %351 = vmatpush1.bf16.msra.mxu0 %v326
      %352 = vmatprep.subr.bf16.mxu0 0
      %353 = vmatpush1.bf16.msra.mxu0 0
      %354 = vmatprep.subr.bf16.mxu0 0
      %355 = vmatpush1.bf16.msra.mxu0 0
      %356 = vmatprep.subr.bf16.mxu0 0
      %357 = vmatpush1.bf16.msra.mxu0 0
      %358 = vmatprep.subr.bf16.mxu0 0
      %359 = vmatpush1.bf16.msra.mxu0 0
      %360 = vmatprep.subr.bf16.mxu0 0
      %361 = vmatpush1.bf16.msra.mxu0 0
      %362 = vmatprep.subr.bf16.mxu0 0
      %363 = vmatpush1.bf16.msra.mxu0 0
      %364 = vmatprep.subr.bf16.mxu0 0
      %365 = vmatpush1.bf16.msra.mxu0 0
      %366 = vmatprep.subr.bf16.mxu0 0
      %367 = vmatpush1.bf16.msra.mxu0 0
      %368 = vmatprep.subr.bf16.mxu0 0
      %369 = vmatpush1.bf16.msra.mxu0 0
      %370 = vmatprep.subr.bf16.mxu0 0
      %371 = vmatpush1.bf16.msra.mxu0 0
      %372 = vmatprep.subr.bf16.mxu0 0
      %373 = vmatpush1.bf16.msra.mxu0 0
      %374 = vmatprep.subr.bf16.mxu0 0
      %375 = vmatpush1.bf16.msra.mxu0 0
      %376 = vmatprep.subr.bf16.mxu0 0
      %377 = vmatpush1.bf16.msra.mxu0 0
      %378 = vmatprep.subr.bf16.mxu0 0
      %379 = vmatpush1.bf16.msra.mxu0 0
      %380 = vmatprep.mubr.bf16.mxu0 0
      %381 = vmatmul.mubr.bf16.gmra.mrb[0].mxu0 %v331
      %v382 = vpop.f32.mrb[0].mxu0
      %v383 = vadd.f32 0.0, %v382
      %v384 = vpop.f32.mrb[0].mxu0
      %v385 = vpop.f32.mrb[0].mxu0
      %v386 = vadd.f32 0.0, %v385
      %v387 = vpop.f32.mrb[0].mxu0
      %388 = vmatprep.mubr.bf16.mxu0 0
      %389 = vmatmul.mubr.bf16.gmra.mrb[0].mxu0 %v334
      %v390 = vpop.f32.mrb[0].mxu0
      %v391 = vadd.f32 0.0, %v390
      %v392 = vpop.f32.mrb[0].mxu0
      %v393 = vpop.f32.mrb[0].mxu0
      %v394 = vadd.f32 0.0, %v393
      %v395 = vpop.f32.mrb[0].mxu0
      %396 = vmatprep.mubr.bf16.mxu0 0
      %397 = vmatmul.mubr.bf16.gmra.mrb[0].mxu0 %v337
      %v398 = vpop.f32.mrb[0].mxu0
      %v399 = vadd.f32 0.0, %v398
      %v400 = vpop.f32.mrb[0].mxu0
      %v401 = vpop.f32.mrb[0].mxu0
      %v402 = vadd.f32 0.0, %v401
      %v403 = vpop.f32.mrb[0].mxu0
      %404 = vmatprep.mubr.bf16.mxu0 0
      %405 = vmatmul.mubr.bf16.gmra.mrb[0].mxu0 %v340
      %v406 = vpop.f32.mrb[0].mxu0
      %v407 = vadd.f32 0.0, %v406
      %v408 = vpop.f32.mrb[0].mxu0
      %v409 = vpop.f32.mrb[0].mxu0
      %v410 = vadd.f32 0.0, %v409
      %v411 = vpop.f32.mrb[0].mxu0
      %412 = vmatprep.mubr.bf16.mxu0 0
      %413 = vmatmul.mubr.bf16.gmra.mrb[0].mxu0 %v343
      %v414 = vpop.f32.mrb[0].mxu0
      %v415 = vadd.f32 0.0, %v414
      %v416 = vpop.f32.mrb[0].mxu0
      %v417 = vpop.f32.mrb[0].mxu0
      %v418 = vadd.f32 0.0, %v417
      %v419 = vpop.f32.mrb[0].mxu0
      %420 = vmatprep.mubr.bf16.mxu0 0
      %421 = vmatmul.mubr.bf16.gmra.mrb[0].mxu0 %v346
      %v422 = vpop.f32.mrb[0].mxu0
      %v423 = vadd.f32 0.0, %v422
      %v424 = vpop.f32.mrb[0].mxu0
      %v425 = vpop.f32.mrb[0].mxu0
      %v426 = vadd.f32 0.0, %v425
      %v427 = vpop.f32.mrb[0].mxu0
      %428 = vdwg.mxu0
      %v429 = vld [vmem:[%s2] sm:$0x1]
      %v431 = vlaneseq
      %v432 = vshrl.u32 %v431, 7
      %v433 = vsub.s32 0, %v432
      %v434 = vrot.slane %v429, %v433
      %v436 = vmul.f32 %v383, %v434
      %v437 = vmul.f32 %v386, %v434
      %v438 = vmul.f32 %v391, %v434
      %v439 = vmul.f32 %v394, %v434
      %v440 = vmul.f32 %v399, %v434
      %v441 = vmul.f32 %v402, %v434
      %v442 = vmul.f32 %v407, %v434
      %v443 = vmul.f32 %v410, %v434
      %v444 = vmul.f32 %v415, %v434
      %v445 = vmul.f32 %v418, %v434
      %v446 = vmul.f32 %v423, %v434
      %v447 = vmul.f32 %v426, %v434
      %v448 = vld [vmem:[%s3] sm:$0x1]
      %v450 = vlaneseq
      %v451 = vshrl.u32 %v450, 7
      %v452 = vsub.s32 0, %v451
      %v453 = vrot.slane %v448, %v452
      %v455 = vadd.f32 %v436, %v453
      %v456 = vadd.f32 %v437, %v453
      %v457 = vadd.f32 %v438, %v453
      %v458 = vadd.f32 %v439, %v453
      %v459 = vadd.f32 %v440, %v453
      %v460 = vadd.f32 %v441, %v453
      %v461 = vadd.f32 %v442, %v453
      %v462 = vadd.f32 %v443, %v453
      %v463 = vadd.f32 %v444, %v453
      %v464 = vadd.f32 %v445, %v453
      %v465 = vadd.f32 %v446, %v453
      %v466 = vadd.f32 %v447, %v453
      %v467 = vmax.f32 %v455, 0.0
      %v468 = vmax.f32 %v456, 0.0
      %v469 = vmax.f32 %v457, 0.0
      %v470 = vmax.f32 %v458, 0.0
      %v471 = vmax.f32 %v459, 0.0
      %v472 = vmax.f32 %v460, 0.0
      %v473 = vmax.f32 %v461, 0.0
      %v474 = vmax.f32 %v462, 0.0
      %v475 = vmax.f32 %v463, 0.0
      %v476 = vmax.f32 %v464, 0.0
      %v477 = vmax.f32 %v465, 0.0
      %v478 = vmax.f32 %v466, 0.0
      %v491 = vcombine.high %v467, %v467
      %v492 = vcombine.high %v468, %v468
      %v493 = vcombine.high %v469, %v469
      %v494 = vcombine.high %v470, %v470
      %v495 = vcombine.high %v471, %v471
      %v496 = vcombine.high %v472, %v472
      %v497 = vcombine.high %v473, %v473
      %v498 = vcombine.high %v474, %v474
      %v499 = vcombine.high %v475, %v475
      %v500 = vcombine.high %v476, %v476
      %v501 = vcombine.high %v477, %v477
      %v502 = vcombine.high %v478, %v478
      %v507 = vcombine.low %v467, %v491
      %v508 = vcombine.low %v492, %v469
      %v509 = vcombine.low %v470, %v494
      %v510 = vcombine.low %v495, %v472
      %v511 = vcombine.low %v473, %v497
      %v512 = vcombine.low %v498, %v475
      %v513 = vcombine.low %v476, %v500
      %v514 = vcombine.low %v501, %v478
      %523 = vst.msk [vmem:[%s240] sm:$0xff] %vm329, %v507
      %vm524 = vcmask 257024
      %525 = vst.msk [vmem:[%s240 + $0x8] sm:$0xf] %vm524, %v468
      %526 = vst.msk [vmem:[%s240 + $0x10] sm:$0xff] %vm329, %v508
      %527 = vst.msk [vmem:[%s240 + $0x18] sm:$0xf] %vm524, %v493
      %528 = vst.msk [vmem:[%s240 + $0x20] sm:$0xff] %vm329, %v509
      %529 = vst.msk [vmem:[%s240 + $0x28] sm:$0xf] %vm524, %v471
      %530 = vst.msk [vmem:[%s240 + $0x30] sm:$0xff] %vm329, %v510
      %531 = vst.msk [vmem:[%s240 + $0x38] sm:$0xf] %vm524, %v496
      %532 = vst.msk [vmem:[%s240 + $0x40] sm:$0xff] %vm329, %v511
      %533 = vst.msk [vmem:[%s240 + $0x48] sm:$0xf] %vm524, %v474
      %534 = vst.msk [vmem:[%s240 + $0x50] sm:$0xff] %vm329, %v512
      %535 = vst.msk [vmem:[%s240 + $0x58] sm:$0xf] %vm524, %v499
      %536 = vst.msk [vmem:[%s240 + $0x60] sm:$0xff] %vm329, %v513
      %537 = vst.msk [vmem:[%s240 + $0x68] sm:$0xf] %vm524, %v477
      %538 = vst.msk [vmem:[%s240 + $0x70] sm:$0xff] %vm329, %v514
      %539 = vst.msk [vmem:[%s240 + $0x78] sm:$0xf] %vm524, %v502
      %s540 = smul.u32 8, %s20
      %p541 = scmp.lt.s32.totalorder %s19, 1
      %s542 = scalar_select %p541, %s19, 1
      %p543 = scmp.lt.s32.totalorder %s540, 7
      %s544 = scalar_select %p543, %s540, 7
      %s545 = smul.addr %s544, 2
      %s546 = smul.addr %s542, 16
      %s547 = sadd.s32 %s545, %s546
      %s548 = smul.addr %s547, 8
      %s549 = scalar_lea.vmem %s4, %s548
      // Predicated region
      $region37: #{tpu_custom_call.1} parent=35 // pred_check
        %p550 = pneg %p138
      $region38: #{tpu_custom_call.1} parent=35 // pred_check_branch
        %552 = sbr.rel (%p550) target = $region40
      $region39: #{tpu_custom_call.1} parent=35 // pred_region
        %s553 = smul.u32 8, %s20
      $region40: #{tpu_custom_call.1} parent=35 // pred_fallthru
        _
    $region36: #{tpu_custom_call.1} parent=5 // pred_fallthru
      _
    %p554 = scmp.le.s32.totalorder 2, %s10
    // Predicated region
    $region41: #{tpu_custom_call.1} parent=5 // pred_check
      %p555 = pneg %p554
    $region42: #{tpu_custom_call.1} parent=5 // pred_check_branch
      %557 = sbr.rel (%p555) target = $region44
    $region43: #{tpu_custom_call.1} parent=5 // pred_region
      %s558 = ssub.s32 %s10, 2
      // Predicated region
      $region45: #{tpu_custom_call.1} parent=43 // pred_check
        %p559 = pneg %p144
      $region46: #{tpu_custom_call.1} parent=43 // pred_check_branch
        %561 = sbr.rel (%p559) target = $region48
      $region47: #{tpu_custom_call.1} parent=43 // pred_region
        %s562 = smul.u32 8, %s22
        %p563 = scmp.lt.s32.totalorder %s21, 1
        %s564 = scalar_select %p563, %s21, 1
        %p565 = scmp.lt.s32.totalorder %s562, 7
        %s566 = scalar_select %p565, %s562, 7
        %s567 = smul.addr %s566, 2
        %s568 = smul.addr %s564, 16
        %s569 = sadd.s32 %s567, %s568
        %s570 = smul.addr %s569, 8
        %s571 = scalar_lea.vmem %s4, %s570
      $region48: #{tpu_custom_call.1} parent=43 // pred_fallthru
        _
    $region44: #{tpu_custom_call.1} parent=5 // pred_fallthru
      _
  $region6: #{tpu_custom_call.1} parent=0 // loop_footer
    %s14 = sadd.s32 1, %s10
  $region7: #{tpu_custom_call.1} parent=0 // loop_footer_branch
    %9 = sbr.rel target = $region3
  $region8: #{tpu_custom_call.1} parent=0 // loop_exit
    _

</llo_original>
